<compile_context>
chip_gen: v7x
topology: tpu7x:2x2x1
jax: 0.10.0
libtpu: 0.0.40
codegen_flags: <defaults>
</compile_context>

<pallas_src>
import jax
import jax.numpy as jnp
from jax.experimental import pallas as pl
from jax.experimental.pallas import tpu as pltpu

BN_EPS = 1e-5
LANE = 128                       # TPU lane width
SUBLANE = 8                      # f32 sublane packing
VMEM_LIMIT_BYTES = 48 * 1024 * 1024   # raise scoped-VMEM limit (default 16/32 MiB)


def _round_up(x, m):
    return (x + m - 1) // m * m


# ---------------------------------------------------------------------------
# Kernel 1: conv (im2col GEMM) + bias + per-tile partial BN statistics.
# ---------------------------------------------------------------------------
def conv_stats_kernel(p_ref, w_ref, b_ref, y_ref, sum_ref, sq_ref):
    # MXU matmul, f32 accumulation (inputs may be bf16 for full MXU rate).
    yc = jnp.dot(p_ref[...], w_ref[...], preferred_element_type=jnp.float32)
    # Conv output (bias added) for this M-tile.
    y_ref[...] = (yc + b_ref[...]).astype(y_ref.dtype)
    # Per-channel partial sums of the *pre-bias* response.  Zero-padded M rows
    # produce exactly zero, so they do not pollute the statistics.
    s1 = jnp.sum(yc, axis=0, keepdims=True)         # (1, Cp)
    s2 = jnp.sum(yc * yc, axis=0, keepdims=True)    # (1, Cp)
    # Stats blocks are (8, Cp) to satisfy the (8, 128) tiling constraint;
    # row 0 of each block is consumed by the wrapper.
    sum_ref[...] = jnp.broadcast_to(s1, sum_ref.shape)
    sq_ref[...] = jnp.broadcast_to(s2, sq_ref.shape)


# ---------------------------------------------------------------------------
# Kernel 2: apply precomputed per-channel scale/shift (one FMA per element).
# ---------------------------------------------------------------------------
def bn_apply_kernel(y_ref, scale_ref, shift_ref, out_ref):
    out_ref[...] = (y_ref[...] * scale_ref[...] + shift_ref[...]).astype(out_ref.dtype)


def _im2col_nchw(x, kh, kw, stride, padding):
    """x: (N, Cin, H, W) -> patches (N*OH*OW, KH*KW*Cin), ordering (kh, kw, cin)."""
    n, cin, h, w = x.shape
    sh, sw = stride
    ph, pw = padding
    x_nhwc = jnp.transpose(x, (0, 2, 3, 1))
    x_pad = jnp.pad(x_nhwc, ((0, 0), (ph, ph), (pw, pw), (0, 0)))
    oh = (h + 2 * ph - kh) // sh + 1
    ow = (w + 2 * pw - kw) // sw + 1
    cols = []
    for i in range(kh):
        for j in range(kw):
            patch = x_pad[:, i:i + (oh - 1) * sh + 1:sh, j:j + (ow - 1) * sw + 1:sw, :]
            cols.append(patch)                                   # (N, OH, OW, Cin)
    patches = jnp.concatenate(cols, axis=-1)                     # (N, OH, OW, KH*KW*Cin)
    return patches.reshape(n * oh * ow, kh * kw * cin), (n, oh, ow)


def conv_norm2d_forward(x, conv_w, conv_b, bn_gamma, bn_beta,
                        stride=(1, 1), padding=(1, 1),
                        tile_m=512, compute_dtype=jnp.bfloat16):
    """Forward of ConvNorm2d (Conv2d + training-mode BatchNorm2d).

    x: (N, Cin, H, W) NCHW, conv_w: (Cout, Cin, KH, KW) OIHW (PyTorch layouts).
    Returns NCHW float output, matching the PyTorch module.
    """
    cout, cin, kh, kw = conv_w.shape
    patches, (n, oh, ow) = _im2col_nchw(x, kh, kw, stride, padding)   # (M, K)
    m, k = patches.shape

    # Lane/sublane friendly padded shapes.
    kp = _round_up(k, LANE)
    cp = _round_up(cout, LANE)
    tile_m = _round_up(max(SUBLANE, min(tile_m, _round_up(m, SUBLANE))), SUBLANE)
    mp = _round_up(m, tile_m)
    num_tiles = mp // tile_m

    # Weight -> (KH, KW, Cin, Cout) -> (K, Cout), matching patch ordering.
    w2d = jnp.transpose(conv_w, (2, 3, 1, 0)).reshape(k, cout)

    # Zero padding is exact: padded K columns / Cout columns / M rows contribute
    # nothing to the matmul or to the batch statistics.
    patches_p = jnp.pad(patches.astype(compute_dtype), ((0, mp - m), (0, kp - k)))
    w_p = jnp.pad(w2d.astype(compute_dtype), ((0, kp - k), (0, cp - cout)))
    b_p = jnp.pad(conv_b.astype(jnp.float32), (0, cp - cout)).reshape(1, cp)
    g_p = jnp.pad(bn_gamma.astype(jnp.float32), (0, cp - cout))
    be_p = jnp.pad(bn_beta.astype(jnp.float32), (0, cp - cout))

    itemsize = jnp.dtype(compute_dtype).itemsize
    cost = pl.CostEstimate(
        flops=2 * mp * kp * cp,
        transcendentals=0,
        bytes_accessed=mp * kp * itemsize + kp * cp * itemsize + mp * cp * 4,
    )

    # ---- pass 1: conv + bias + per-tile partial stats ----------------------
    y_p, psum, psq = pl.pallas_call(
        conv_stats_kernel,
        grid_spec=pltpu.PrefetchScalarGridSpec(
            num_scalar_prefetch=0,
            grid=(num_tiles,),
            in_specs=[
                pl.BlockSpec((tile_m, kp), lambda i: (i, 0)),    # patches tile
                pl.BlockSpec((kp, cp), lambda i: (0, 0)),        # weight (resident)
                pl.BlockSpec((1, cp), lambda i: (0, 0)),         # bias (resident)
            ],
            out_specs=[
                pl.BlockSpec((tile_m, cp), lambda i: (i, 0)),    # conv + bias
                pl.BlockSpec((SUBLANE, cp), lambda i: (i, 0)),   # partial sum
                pl.BlockSpec((SUBLANE, cp), lambda i: (i, 0)),   # partial sumsq
            ],
        ),
        out_shape=(
            jax.ShapeDtypeStruct((mp, cp), jnp.float32),
            jax.ShapeDtypeStruct((num_tiles * SUBLANE, cp), jnp.float32),
            jax.ShapeDtypeStruct((num_tiles * SUBLANE, cp), jnp.float32),
        ),
        compiler_params=pltpu.CompilerParams(
            dimension_semantics=("parallel",),
            vmem_limit_bytes=VMEM_LIMIT_BYTES),
        cost_estimate=cost,
    )(patches_p, w_p, b_p)

    # ---- tiny JAX glue: reduce partials, build per-channel scale/shift -----
    count = float(m)                                  # true row count (excludes M padding)
    ch_sum = jnp.sum(psum.reshape(num_tiles, SUBLANE, cp)[:, 0, :], axis=0)
    ch_sq = jnp.sum(psq.reshape(num_tiles, SUBLANE, cp)[:, 0, :], axis=0)
    mean_c = ch_sum / count                           # mean of pre-bias response
    var = jnp.maximum(ch_sq / count - mean_c * mean_c, 0.0)   # biased (training-mode) var
    inv_std = jax.lax.rsqrt(var + BN_EPS)
    scale = g_p * inv_std                             # gamma / sqrt(var + eps)
    shift = be_p - (mean_c + b_p[0]) * scale          # beta - mean_y * scale
    scale2 = scale.reshape(1, cp)
    shift2 = shift.reshape(1, cp)

    # ---- pass 2: normalize with a single fused multiply-add ----------------
    out_p = pl.pallas_call(
        bn_apply_kernel,
        grid_spec=pltpu.PrefetchScalarGridSpec(
            num_scalar_prefetch=0,
            grid=(num_tiles,),
            in_specs=[
                pl.BlockSpec((tile_m, cp), lambda i: (i, 0)),
                pl.BlockSpec((1, cp), lambda i: (0, 0)),
                pl.BlockSpec((1, cp), lambda i: (0, 0)),
            ],
            out_specs=pl.BlockSpec((tile_m, cp), lambda i: (i, 0)),
        ),
        out_shape=jax.ShapeDtypeStruct((mp, cp), x.dtype),
        compiler_params=pltpu.CompilerParams(
            dimension_semantics=("parallel",),
            vmem_limit_bytes=VMEM_LIMIT_BYTES),
    )(y_p, scale2, shift2)

    # Slice off padding, back to NCHW (module contract).  If the consumer can
    # take NHWC, dropping this transpose saves one HBM round trip.
    out2d = out_p[:m, :cout]
    return jnp.transpose(out2d.reshape(n, oh, ow, cout), (0, 3, 1, 2))


def _reference(x, conv_w, conv_b, bn_gamma, bn_beta, stride=(1, 1), padding=(1, 1)):
    y = jax.lax.conv_general_dilated(
        x.astype(jnp.float32), conv_w.astype(jnp.float32),
        window_strides=stride,
        padding=[(padding[0], padding[0]), (padding[1], padding[1])],
        dimension_numbers=("NCHW", "OIHW", "NCHW"))
    y = y + conv_b.reshape(1, -1, 1, 1)
    mean = jnp.mean(y, axis=(0, 2, 3), keepdims=True)
    var = jnp.mean((y - mean) ** 2, axis=(0, 2, 3), keepdims=True)
    return bn_gamma.reshape(1, -1, 1, 1) * (y - mean) * jax.lax.rsqrt(var + BN_EPS) \
        + bn_beta.reshape(1, -1, 1, 1)


if __name__ == "__main__":
    # Shapes consistent with ConvNorm2d(4, 8, kernel_size=3, stride=1, padding=1).
    N, CIN, H, W = 2, 4, 16, 16
    COUT, KH, KW = 8, 3, 3

    key = jax.random.PRNGKey(0)
    kx, kw_, kb = jax.random.split(key, 3)
    x = jax.random.normal(kx, (N, CIN, H, W), dtype=jnp.float32)
    conv_w = jax.random.normal(kw_, (COUT, CIN, KH, KW), dtype=jnp.float32) * 0.1
    conv_b = jax.random.normal(kb, (COUT,), dtype=jnp.float32) * 0.1
    bn_gamma = jnp.ones((COUT,), dtype=jnp.float32)    # PyTorch BatchNorm2d init
    bn_beta = jnp.zeros((COUT,), dtype=jnp.float32)

    fwd = jax.jit(conv_norm2d_forward,
                  static_argnames=("stride", "padding", "tile_m", "compute_dtype"))

    ref = _reference(x, conv_w, conv_b, bn_gamma, bn_beta, stride=(1, 1), padding=(1, 1))

    # f32 compute path, 4 M-tiles (exercises the cross-tile stats reduction).
    out = fwd(x, conv_w, conv_b, bn_gamma, bn_beta, stride=(1, 1), padding=(1, 1),
              tile_m=128, compute_dtype=jnp.float32)
    jax.block_until_ready(out)
    assert out.shape == (N, COUT, H, W)
    assert jnp.allclose(out, ref, atol=1e-4, rtol=1e-4)

    # bf16 MXU path (f32 accumulation / BN math); tile_m=192 does not divide
    # M = 512, so the zero-padded-rows path is exercised too.
    out_bf16 = fwd(x, conv_w, conv_b, bn_gamma, bn_beta, stride=(1, 1), padding=(1, 1),
                   tile_m=192, compute_dtype=jnp.bfloat16)
    jax.block_until_ready(out_bf16)
    assert out_bf16.shape == (N, COUT, H, W)
    assert jnp.allclose(out_bf16, ref, atol=2e-2, rtol=2e-2)

    print("KERNEL_OK")
</pallas_src>

<mosaic_0001>
module attributes {stable_mosaic.version = 11 : i64} {
  func.func @conv_stats_kernel(%arg0: i32, %arg1: memref<128x128xf32, #tpu.memory_space<vmem>>, %arg2: memref<128x128xf32, #tpu.memory_space<vmem>>, %arg3: memref<1x128xf32, #tpu.memory_space<vmem>>, %arg4: memref<128x128xf32, #tpu.memory_space<vmem>>, %arg5: memref<8x128xf32, #tpu.memory_space<vmem>>, %arg6: memref<8x128xf32, #tpu.memory_space<vmem>>) attributes {dimension_semantics = [#tpu.dimension_semantics<parallel>], iteration_bounds = array<i64: 4>, scalar_prefetch = 0 : i64, scratch_operands = 0 : i64, tpu.core_type = #tpu.core_type<tc>, window_params = [{transform_indices = @transform_0, window_bounds = array<i64: 128, 128>}, {pipeline_mode = #tpu.pipeline_mode<synchronous>, transform_indices = @transform_1, window_bounds = array<i64: 128, 128>}, {pipeline_mode = #tpu.pipeline_mode<synchronous>, transform_indices = @transform_2, window_bounds = array<i64: 1, 128>}, {transform_indices = @transform_3, window_bounds = array<i64: 128, 128>}, {transform_indices = @transform_4, window_bounds = array<i64: 8, 128>}, {transform_indices = @transform_5, window_bounds = array<i64: 8, 128>}]} {
    %c0 = arith.constant 0 : index
    %c0_0 = arith.constant 0 : index
    %0 = vector.load %arg1[%c0, %c0_0] : memref<128x128xf32, #tpu.memory_space<vmem>>, vector<128x128xf32>
    %c0_1 = arith.constant 0 : index
    %c0_2 = arith.constant 0 : index
    %1 = vector.load %arg2[%c0_1, %c0_2] : memref<128x128xf32, #tpu.memory_space<vmem>>, vector<128x128xf32>
    %cst = arith.constant dense<0.000000e+00> : vector<128x128xf32>
    %2 = tpu.matmul %0, %1, %cst {dimension_numbers = #tpu.dot_dimension_numbers<[1], [0], [0], [1], [0, 0, 1, 1], [], []>} : vector<128x128xf32>, vector<128x128xf32>, vector<128x128xf32> -> vector<128x128xf32>
    %c0_3 = arith.constant 0 : index
    %c0_4 = arith.constant 0 : index
    %3 = vector.load %arg3[%c0_3, %c0_4] : memref<1x128xf32, #tpu.memory_space<vmem>>, vector<1x128xf32>
    %4 = vector.broadcast %3 : vector<1x128xf32> to vector<128x128xf32>
    %5 = arith.addf %2, %4 : vector<128x128xf32>
    %c0_5 = arith.constant 0 : index
    %c0_6 = arith.constant 0 : index
    %6 = vector.load %arg4[%c0_5, %c0_6] : memref<128x128xf32, #tpu.memory_space<vmem>>, vector<128x128xf32>
    tpu.vector_store %arg4[%c0_5, %c0_6], %5 {strides = array<i32>} : memref<128x128xf32, #tpu.memory_space<vmem>>, vector<128x128xf32>,
    %cst_7 = arith.constant dense<0.000000e+00> : vector<128xf32>
    %7 = vector.multi_reduction <add>, %2, %cst_7 [0] : vector<128x128xf32> to vector<128xf32>
    %8 = vector.shape_cast %7 : vector<128xf32> to vector<1x128xf32>
    %9 = arith.mulf %2, %2 : vector<128x128xf32>
    %cst_8 = arith.constant dense<0.000000e+00> : vector<128xf32>
    %10 = vector.multi_reduction <add>, %9, %cst_8 [0] : vector<128x128xf32> to vector<128xf32>
    %11 = vector.shape_cast %10 : vector<128xf32> to vector<1x128xf32>
    %12 = vector.shape_cast %8 : vector<1x128xf32> to vector<1x128xf32>
    %13 = vector.broadcast %12 : vector<1x128xf32> to vector<8x128xf32>
    %c0_9 = arith.constant 0 : index
    %c0_10 = arith.constant 0 : index
    %14 = vector.load %arg5[%c0_9, %c0_10] : memref<8x128xf32, #tpu.memory_space<vmem>>, vector<8x128xf32>
    tpu.vector_store %arg5[%c0_9, %c0_10], %13 {strides = array<i32>} : memref<8x128xf32, #tpu.memory_space<vmem>>, vector<8x128xf32>,
    %15 = vector.shape_cast %11 : vector<1x128xf32> to vector<1x128xf32>
    %16 = vector.broadcast %15 : vector<1x128xf32> to vector<8x128xf32>
    %c0_11 = arith.constant 0 : index
    %c0_12 = arith.constant 0 : index
    %17 = vector.load %arg6[%c0_11, %c0_12] : memref<8x128xf32, #tpu.memory_space<vmem>>, vector<8x128xf32>
    tpu.vector_store %arg6[%c0_11, %c0_12], %16 {strides = array<i32>} : memref<8x128xf32, #tpu.memory_space<vmem>>, vector<8x128xf32>,
    return
  }
  func.func @transform_0(%arg0: i32) -> (i32, i32) {
    %c0_i32 = arith.constant 0 : i32
    %c0_i32_0 = arith.constant 0 : i32
    return %arg0, %c0_i32 : i32, i32
  }
  func.func @transform_1(%arg0: i32) -> (i32, i32) {
    %c0_i32 = arith.constant 0 : i32
    %c0_i32_0 = arith.constant 0 : i32
    %c0_i32_1 = arith.constant 0 : i32
    return %c0_i32, %c0_i32_0 : i32, i32
  }
  func.func @transform_2(%arg0: i32) -> (i32, i32) {
    %c0_i32 = arith.constant 0 : i32
    %c0_i32_0 = arith.constant 0 : i32
    %c0_i32_1 = arith.constant 0 : i32
    return %c0_i32, %c0_i32_0 : i32, i32
  }
  func.func @transform_3(%arg0: i32) -> (i32, i32) {
    %c0_i32 = arith.constant 0 : i32
    %c0_i32_0 = arith.constant 0 : i32
    return %arg0, %c0_i32 : i32, i32
  }
  func.func @transform_4(%arg0: i32) -> (i32, i32) {
    %c0_i32 = arith.constant 0 : i32
    %c0_i32_0 = arith.constant 0 : i32
    return %arg0, %c0_i32 : i32, i32
  }
  func.func @transform_5(%arg0: i32) -> (i32, i32) {
    %c0_i32 = arith.constant 0 : i32
    %c0_i32_0 = arith.constant 0 : i32
    return %arg0, %c0_i32 : i32, i32
  }
}

module attributes {stable_mosaic.version = 11 : i64} {
  func.func @bn_apply_kernel(%arg0: i32, %arg1: memref<128x128xf32, #tpu.memory_space<vmem>>, %arg2: memref<1x128xf32, #tpu.memory_space<vmem>>, %arg3: memref<1x128xf32, #tpu.memory_space<vmem>>, %arg4: memref<128x128xf32, #tpu.memory_space<vmem>>) attributes {dimension_semantics = [#tpu.dimension_semantics<parallel>], iteration_bounds = array<i64: 4>, scalar_prefetch = 0 : i64, scratch_operands = 0 : i64, tpu.core_type = #tpu.core_type<tc>, window_params = [{transform_indices = @transform_0, window_bounds = array<i64: 128, 128>}, {pipeline_mode = #tpu.pipeline_mode<synchronous>, transform_indices = @transform_1, window_bounds = array<i64: 1, 128>}, {pipeline_mode = #tpu.pipeline_mode<synchronous>, transform_indices = @transform_2, window_bounds = array<i64: 1, 128>}, {transform_indices = @transform_3, window_bounds = array<i64: 128, 128>}]} {
    %c0 = arith.constant 0 : index
    %c0_0 = arith.constant 0 : index
    %0 = vector.load %arg1[%c0, %c0_0] : memref<128x128xf32, #tpu.memory_space<vmem>>, vector<128x128xf32>
    %c0_1 = arith.constant 0 : index
    %c0_2 = arith.constant 0 : index
    %1 = vector.load %arg2[%c0_1, %c0_2] : memref<1x128xf32, #tpu.memory_space<vmem>>, vector<1x128xf32>
    %2 = vector.broadcast %1 : vector<1x128xf32> to vector<128x128xf32>
    %3 = arith.mulf %0, %2 : vector<128x128xf32>
    %c0_3 = arith.constant 0 : index
    %c0_4 = arith.constant 0 : index
    %4 = vector.load %arg3[%c0_3, %c0_4] : memref<1x128xf32, #tpu.memory_space<vmem>>, vector<1x128xf32>
    %5 = vector.broadcast %4 : vector<1x128xf32> to vector<128x128xf32>
    %6 = arith.addf %3, %5 : vector<128x128xf32>
    %c0_5 = arith.constant 0 : index
    %c0_6 = arith.constant 0 : index
    %7 = vector.load %arg4[%c0_5, %c0_6] : memref<128x128xf32, #tpu.memory_space<vmem>>, vector<128x128xf32>
    tpu.vector_store %arg4[%c0_5, %c0_6], %6 {strides = array<i32>} : memref<128x128xf32, #tpu.memory_space<vmem>>, vector<128x128xf32>,
    return
  }
  func.func @transform_0(%arg0: i32) -> (i32, i32) {
    %c0_i32 = arith.constant 0 : i32
    %c0_i32_0 = arith.constant 0 : i32
    return %arg0, %c0_i32 : i32, i32
  }
  func.func @transform_1(%arg0: i32) -> (i32, i32) {
    %c0_i32 = arith.constant 0 : i32
    %c0_i32_0 = arith.constant 0 : i32
    %c0_i32_1 = arith.constant 0 : i32
    return %c0_i32, %c0_i32_0 : i32, i32
  }
  func.func @transform_2(%arg0: i32) -> (i32, i32) {
    %c0_i32 = arith.constant 0 : i32
    %c0_i32_0 = arith.constant 0 : i32
    %c0_i32_1 = arith.constant 0 : i32
    return %c0_i32, %c0_i32_0 : i32, i32
  }
  func.func @transform_3(%arg0: i32) -> (i32, i32) {
    %c0_i32 = arith.constant 0 : i32
    %c0_i32_0 = arith.constant 0 : i32
    return %arg0, %c0_i32 : i32, i32
  }
}

</mosaic_0001>

<llo_original>
// kernel: conv_norm2d_forward.3
$region0: #{conv_norm2d_forward.3}
  #allocation0 [shape = 'u32[]', space=smem, size = 0x4, offset = 0x4, fixed_abs, tag = 'smem constant byte address 0x4 - core index']
  #allocation1 [shape = 'u32[144,128]{1,0:T(1,128)}', space=vmem, size = 0x12000, scoped, tag = 'internal scratch']
  %s0 = inlined_call_operand.vmem [shape: f32[512,128], index: 0, kind: input, shape index: {}]
  %s1 = inlined_call_operand.vmem [shape: f32[1,128], index: 1, kind: input, shape index: {}]
  %s2 = inlined_call_operand.vmem [shape: f32[1,128], index: 2, kind: input, shape index: {}]
  %s3 = inlined_call_operand.vmem [shape: f32[512,128], index: 3, kind: output, shape index: {}]
  %s4 = sld [smem:[#allocation0]]
  $region45: #{conv_norm2d_forward.3} parent=0
    _
  %s6 = ssub.s32 1, %s4
  %s7 = scalar_select 0, %s6, %s4
  loop: start=0, step=1, limit=6
  $region2: #{conv_norm2d_forward.3} parent=0 // loop_pre_header
    _
  $region3: #{conv_norm2d_forward.3} parent=0 // loop_header
    %s9 = sphi 0, %s13
    %p10 = scmp.ge.s32.totalorder %s9, 6
    %s19 = sphi 0, %s21
    %s22 = sphi 0, %s19
    %s23 = sphi 0, %s22
    %s39 = sphi 0, %s23
    %s43 = sphi 0, %s43
    %s45 = sphi 0, %s43
    %s46 = sphi 0, %s45
    %s60 = sphi 0, %s46
    %s64 = sphi 0, %s64
    %s66 = sphi 0, %s64
    %s67 = sphi 0, %s66
    %s81 = sphi 0, %s67
    %s87 = sphi 0, %s89
    %s90 = sphi 0, %s87
    %s91 = sphi 0, %s90
    %s107 = sphi 0, %s91
  $region4: #{conv_norm2d_forward.3} parent=0 // loop_header_branch
    %12 = sbr.rel (%p10) target = $region8
  $region5: #{conv_norm2d_forward.3} parent=0 // loop_body
    %s14 = ssub.s32 %s9, 1
    %s15 = ssub.s32 %s9, 2
    %s16 = sadd.s32 %s9, 1
    %s17 = ssub.s32 %s9, %s16
    %p18 = scmp.eq.s32.totalorder %s17, 0
    %s20 = sadd.s32 %s19, 1
    %s21 = scalar_select %p18, %s19, %s20
    %p24 = pneg %p18
    %p25 = scmp.eq.s32.totalorder %s9, 3
    %p26 = por %p24, %p25
    %p27 = scmp.ne.s32.totalorder %s19, %s22
    %p28 = scmp.eq.s32.totalorder %s9, 0
    %p29 = por %p27, %p28
    %p30 = scmp.ne.s32.totalorder %s19, %s22
    %p31 = scmp.eq.s32.totalorder %s14, 3
    %p32 = por %p30, %p31
    %p33 = scmp.ne.s32.totalorder %s22, %s23
    %p34 = scmp.eq.s32.totalorder %s14, 0
    %p35 = por %p33, %p34
    %p36 = scmp.ne.s32.totalorder %s22, %s23
    %p37 = scmp.eq.s32.totalorder %s15, 3
    %p38 = por %p36, %p37
    %p40 = scmp.ne.s32.totalorder %s23, %s39
    %p41 = scmp.eq.s32.totalorder %s15, 0
    %p42 = por %p40, %p41
    %s44 = sadd.s32 %s43, 1
    %p47 = scmp.eq.s32.totalorder %s9, 3
    %p48 = scmp.ne.s32.totalorder %s43, %s45
    %p49 = scmp.eq.s32.totalorder %s9, 0
    %p50 = por %p48, %p49
    %p51 = scmp.ne.s32.totalorder %s43, %s45
    %p52 = scmp.eq.s32.totalorder %s14, 3
    %p53 = por %p51, %p52
    %p54 = scmp.ne.s32.totalorder %s45, %s46
    %p55 = scmp.eq.s32.totalorder %s14, 0
    %p56 = por %p54, %p55
    %p57 = scmp.ne.s32.totalorder %s45, %s46
    %p58 = scmp.eq.s32.totalorder %s15, 3
    %p59 = por %p57, %p58
    %p61 = scmp.ne.s32.totalorder %s46, %s60
    %p62 = scmp.eq.s32.totalorder %s15, 0
    %p63 = por %p61, %p62
    %s65 = sadd.s32 %s64, 1
    %p68 = scmp.eq.s32.totalorder %s9, 3
    %p69 = scmp.ne.s32.totalorder %s64, %s66
    %p70 = scmp.eq.s32.totalorder %s9, 0
    %p71 = por %p69, %p70
    %p72 = scmp.ne.s32.totalorder %s64, %s66
    %p73 = scmp.eq.s32.totalorder %s14, 3
    %p74 = por %p72, %p73
    %p75 = scmp.ne.s32.totalorder %s66, %s67
    %p76 = scmp.eq.s32.totalorder %s14, 0
    %p77 = por %p75, %p76
    %p78 = scmp.ne.s32.totalorder %s66, %s67
    %p79 = scmp.eq.s32.totalorder %s15, 3
    %p80 = por %p78, %p79
    %p82 = scmp.ne.s32.totalorder %s67, %s81
    %p83 = scmp.eq.s32.totalorder %s15, 0
    %p84 = por %p82, %p83
    %s85 = ssub.s32 %s9, %s16
    %p86 = scmp.eq.s32.totalorder %s85, 0
    %s88 = sadd.s32 %s87, 1
    %s89 = scalar_select %p86, %s87, %s88
    %p92 = pneg %p86
    %p93 = scmp.eq.s32.totalorder %s9, 3
    %p94 = por %p92, %p93
    %p95 = scmp.ne.s32.totalorder %s87, %s90
    %p96 = scmp.eq.s32.totalorder %s9, 0
    %p97 = por %p95, %p96
    %p98 = scmp.ne.s32.totalorder %s87, %s90
    %p99 = scmp.eq.s32.totalorder %s14, 3
    %p100 = por %p98, %p99
    %p101 = scmp.ne.s32.totalorder %s90, %s91
    %p102 = scmp.eq.s32.totalorder %s14, 0
    %p103 = por %p101, %p102
    %p104 = scmp.ne.s32.totalorder %s90, %s91
    %p105 = scmp.eq.s32.totalorder %s15, 3
    %p106 = por %p104, %p105
    %p108 = scmp.ne.s32.totalorder %s91, %s107
    %p109 = scmp.eq.s32.totalorder %s15, 0
    %p110 = por %p108, %p109
    %p111 = scmp.le.s32.totalorder 1, %s9
    %p112 = scmp.lt.s32.totalorder %s9, 5
    %p113 = pnand %p111, %p112
    %p114 = pneg %p113
    // Predicated region
    $region9: #{conv_norm2d_forward.3} parent=5 // pred_check
      _
    $region10: #{conv_norm2d_forward.3} parent=5 // pred_check_branch
      %116 = sbr.rel (%p113) target = $region12
    $region11: #{conv_norm2d_forward.3} parent=5 // pred_region
      %s117 = ssub.s32 %s9, 1
      // Predicated region
      $region13: #{conv_norm2d_forward.3} parent=11 // pred_check
        %p118 = pneg %p56
      $region14: #{conv_norm2d_forward.3} parent=11 // pred_check_branch
        %120 = sbr.rel (%p118) target = $region16
      $region15: #{conv_norm2d_forward.3} parent=11 // pred_region
        _
      $region16: #{conv_norm2d_forward.3} parent=11 // pred_fallthru
        _
      // Predicated region
      $region17: #{conv_norm2d_forward.3} parent=11 // pred_check
        %p121 = pneg %p77
      $region18: #{conv_norm2d_forward.3} parent=11 // pred_check_branch
        %123 = sbr.rel (%p121) target = $region20
      $region19: #{conv_norm2d_forward.3} parent=11 // pred_region
        _
      $region20: #{conv_norm2d_forward.3} parent=11 // pred_fallthru
        _
    $region12: #{conv_norm2d_forward.3} parent=5 // pred_fallthru
      _
    %p124 = scmp.lt.s32.totalorder %s9, 4
    // Predicated region
    $region21: #{conv_norm2d_forward.3} parent=5 // pred_check
      %p125 = pneg %p124
    $region22: #{conv_norm2d_forward.3} parent=5 // pred_check_branch
      %127 = sbr.rel (%p125) target = $region24
    $region23: #{conv_norm2d_forward.3} parent=5 // pred_region
      // Predicated region
      $region25: #{conv_norm2d_forward.3} parent=23 // pred_check
        %p128 = pneg %p29
      $region26: #{conv_norm2d_forward.3} parent=23 // pred_check_branch
        %130 = sbr.rel (%p128) target = $region28
      $region27: #{conv_norm2d_forward.3} parent=23 // pred_region
        %s131 = smul.u32 16, %s9
        %p132 = scmp.lt.s32.totalorder %s131, 63
        %s133 = scalar_select %p132, %s131, 63
        %s134 = smul.addr %s133, 8
        %s135 = scalar_lea.vmem %s0, %s134
        %s136 = smul.u32 16, %s9
      $region28: #{conv_norm2d_forward.3} parent=23 // pred_fallthru
        _
    $region24: #{conv_norm2d_forward.3} parent=5 // pred_fallthru
      _
    %p137 = scmp.le.s32.totalorder 1, %s9
    %p138 = scmp.lt.s32.totalorder %s9, 5
    %p139 = pnand %p137, %p138
    %p140 = pneg %p139
    // Predicated region
    $region29: #{conv_norm2d_forward.3} parent=5 // pred_check
      _
    $region30: #{conv_norm2d_forward.3} parent=5 // pred_check_branch
      %142 = sbr.rel (%p139) target = $region32
    $region31: #{conv_norm2d_forward.3} parent=5 // pred_region
      %s143 = ssub.s32 %s9, 1
      %s144 = smul.u32 16, %s14
      %p145 = scmp.lt.s32.totalorder %s144, 63
      %s146 = scalar_select %p145, %s144, 63
      %s147 = smul.addr %s146, 8
      %s148 = scalar_lea.vmem %s0, %s147
      %p149 = pneg %p35
      %p150 = pneg %p32
      %p151 = pneg %p56
      %p152 = pneg %p53
      %p153 = pneg %p77
      %p154 = pneg %p74
      %p155 = pneg %p103
      %p156 = pneg %p100
      %s157 = smul.u32 16, %s14
      %p158 = scmp.lt.s32.totalorder %s157, 63
      %s159 = scalar_select %p158, %s157, 63
      %s160 = smul.addr %s159, 8
      %s161 = scalar_lea.vmem %s3, %s160
      %s162 = smul.u32 16, %s14
      %p163 = scmp.lt.s32.totalorder %s162, 63
      %s164 = scalar_select %p163, %s162, 63
      %s165 = smul.addr %s164, 8
      %s166 = scalar_lea.vmem %s0, %s165
      %s167 = smul.u32 16, %s14
      %s168 = smul.u32 16, %s14
      %p169 = scmp.lt.s32.totalorder %s168, 63
      %s170 = scalar_select %p169, %s168, 63
      %s171 = smul.addr %s170, 8
      %s172 = scalar_lea.vmem %s3, %s171
      %s173 = smul.u32 16, %s14
      %v174 = vld [vmem:[%s166] sm:$0xff]
      %v175 = vld [vmem:[%s166 + $0x8] sm:$0xff]
      %v176 = vld [vmem:[%s166 + $0x10] sm:$0xff]
      %v177 = vld [vmem:[%s166 + $0x18] sm:$0xff]
      %v178 = vld [vmem:[%s166 + $0x20] sm:$0xff]
      %v179 = vld [vmem:[%s166 + $0x28] sm:$0xff]
      %v180 = vld [vmem:[%s166 + $0x30] sm:$0xff]
      %v181 = vld [vmem:[%s166 + $0x38] sm:$0xff]
      %v182 = vld [vmem:[%s166 + $0x40] sm:$0xff]
      %v183 = vld [vmem:[%s166 + $0x48] sm:$0xff]
      %v184 = vld [vmem:[%s166 + $0x50] sm:$0xff]
      %v185 = vld [vmem:[%s166 + $0x58] sm:$0xff]
      %v186 = vld [vmem:[%s166 + $0x60] sm:$0xff]
      %v187 = vld [vmem:[%s166 + $0x68] sm:$0xff]
      %v188 = vld [vmem:[%s166 + $0x70] sm:$0xff]
      %v189 = vld [vmem:[%s166 + $0x78] sm:$0xff]
      %v190 = vld [vmem:[%s1] sm:$0x1]
      %v192 = vlaneseq
      %v193 = vshrl.u32 %v192, 7
      %v194 = vsub.s32 0, %v193
      %v195 = vrot.slane %v190, %v194
      %v197 = vmul.f32 %v174, %v195
      %v198 = vmul.f32 %v175, %v195
      %v199 = vmul.f32 %v176, %v195
      %v200 = vmul.f32 %v177, %v195
      %v201 = vmul.f32 %v178, %v195
      %v202 = vmul.f32 %v179, %v195
      %v203 = vmul.f32 %v180, %v195
      %v204 = vmul.f32 %v181, %v195
      %v205 = vmul.f32 %v182, %v195
      %v206 = vmul.f32 %v183, %v195
      %v207 = vmul.f32 %v184, %v195
      %v208 = vmul.f32 %v185, %v195
      %v209 = vmul.f32 %v186, %v195
      %v210 = vmul.f32 %v187, %v195
      %v211 = vmul.f32 %v188, %v195
      %v212 = vmul.f32 %v189, %v195
      %v213 = vld [vmem:[%s2] sm:$0x1]
      %v215 = vlaneseq
      %v216 = vshrl.u32 %v215, 7
      %v217 = vsub.s32 0, %v216
      %v218 = vrot.slane %v213, %v217
      %v220 = vadd.f32 %v197, %v218
      %v221 = vadd.f32 %v198, %v218
      %v222 = vadd.f32 %v199, %v218
      %v223 = vadd.f32 %v200, %v218
      %v224 = vadd.f32 %v201, %v218
      %v225 = vadd.f32 %v202, %v218
      %v226 = vadd.f32 %v203, %v218
      %v227 = vadd.f32 %v204, %v218
      %v228 = vadd.f32 %v205, %v218
      %v229 = vadd.f32 %v206, %v218
      %v230 = vadd.f32 %v207, %v218
      %v231 = vadd.f32 %v208, %v218
      %v232 = vadd.f32 %v209, %v218
      %v233 = vadd.f32 %v210, %v218
      %v234 = vadd.f32 %v211, %v218
      %v235 = vadd.f32 %v212, %v218
      %236 = vst [vmem:[%s172] sm:$0xff] %v220
      %237 = vst [vmem:[%s172 + $0x8] sm:$0xff] %v221
      %238 = vst [vmem:[%s172 + $0x10] sm:$0xff] %v222
      %239 = vst [vmem:[%s172 + $0x18] sm:$0xff] %v223
      %240 = vst [vmem:[%s172 + $0x20] sm:$0xff] %v224
      %241 = vst [vmem:[%s172 + $0x28] sm:$0xff] %v225
      %242 = vst [vmem:[%s172 + $0x30] sm:$0xff] %v226
      %243 = vst [vmem:[%s172 + $0x38] sm:$0xff] %v227
      %244 = vst [vmem:[%s172 + $0x40] sm:$0xff] %v228
      %245 = vst [vmem:[%s172 + $0x48] sm:$0xff] %v229
      %246 = vst [vmem:[%s172 + $0x50] sm:$0xff] %v230
      %247 = vst [vmem:[%s172 + $0x58] sm:$0xff] %v231
      %248 = vst [vmem:[%s172 + $0x60] sm:$0xff] %v232
      %249 = vst [vmem:[%s172 + $0x68] sm:$0xff] %v233
      %250 = vst [vmem:[%s172 + $0x70] sm:$0xff] %v234
      %251 = vst [vmem:[%s172 + $0x78] sm:$0xff] %v235
      %s252 = smul.u32 16, %s14
      %p253 = scmp.lt.s32.totalorder %s252, 63
      %s254 = scalar_select %p253, %s252, 63
      %s255 = smul.addr %s254, 8
      %s256 = scalar_lea.vmem %s3, %s255
      // Predicated region
      $region33: #{conv_norm2d_forward.3} parent=31 // pred_check
        %p257 = pneg %p100
      $region34: #{conv_norm2d_forward.3} parent=31 // pred_check_branch
        %259 = sbr.rel (%p257) target = $region36
      $region35: #{conv_norm2d_forward.3} parent=31 // pred_region
        %s260 = smul.u32 16, %s14
      $region36: #{conv_norm2d_forward.3} parent=31 // pred_fallthru
        _
    $region32: #{conv_norm2d_forward.3} parent=5 // pred_fallthru
      _
    %p261 = scmp.le.s32.totalorder 2, %s9
    // Predicated region
    $region37: #{conv_norm2d_forward.3} parent=5 // pred_check
      %p262 = pneg %p261
    $region38: #{conv_norm2d_forward.3} parent=5 // pred_check_branch
      %264 = sbr.rel (%p262) target = $region40
    $region39: #{conv_norm2d_forward.3} parent=5 // pred_region
      %s265 = ssub.s32 %s9, 2
      // Predicated region
      $region41: #{conv_norm2d_forward.3} parent=39 // pred_check
        %p266 = pneg %p106
      $region42: #{conv_norm2d_forward.3} parent=39 // pred_check_branch
        %268 = sbr.rel (%p266) target = $region44
      $region43: #{conv_norm2d_forward.3} parent=39 // pred_region
        %s269 = smul.u32 16, %s15
        %p270 = scmp.lt.s32.totalorder %s269, 63
        %s271 = scalar_select %p270, %s269, 63
        %s272 = smul.addr %s271, 8
        %s273 = scalar_lea.vmem %s3, %s272
      $region44: #{conv_norm2d_forward.3} parent=39 // pred_fallthru
        _
    $region40: #{conv_norm2d_forward.3} parent=5 // pred_fallthru
      _
  $region6: #{conv_norm2d_forward.3} parent=0 // loop_footer
    %s13 = sadd.s32 1, %s9
  $region7: #{conv_norm2d_forward.3} parent=0 // loop_footer_branch
    %8 = sbr.rel target = $region3
  $region8: #{conv_norm2d_forward.3} parent=0 // loop_exit
    _

// kernel: conv_norm2d_forward.2
$region0: #{conv_norm2d_forward.2}
  #allocation0 [shape = 'u32[]', space=smem, size = 0x4, offset = 0x4, fixed_abs, tag = 'smem constant byte address 0x4 - core index']
  #allocation1 [shape = 'u32[144,128]{1,0:T(1,128)}', space=vmem, size = 0x12000, scoped, tag = 'internal scratch']
  %s0 = inlined_call_operand.vmem [shape: f32[512,128], index: 0, kind: input, shape index: {}]
  %s1 = inlined_call_operand.vmem [shape: f32[128,128], index: 1, kind: input, shape index: {}]
  %s2 = inlined_call_operand.vmem [shape: f32[1,128], index: 2, kind: input, shape index: {}]
  %s3 = inlined_call_operand.vmem [shape: f32[512,128], index: 3, kind: output, shape index: {0}]
  %s4 = inlined_call_operand.vmem [shape: f32[32,128], index: 4, kind: output, shape index: {1}]
  %s5 = inlined_call_operand.vmem [shape: f32[32,128], index: 5, kind: output, shape index: {2}]
  %6 = xla_tuple %s3, %s4, %s5
  %s7 = sld [smem:[#allocation0]]
  $region61: #{conv_norm2d_forward.2} parent=0
    _
  %s9 = ssub.s32 1, %s7
  %s10 = scalar_select 0, %s9, %s7
  loop: start=0, step=1, limit=6
  $region2: #{conv_norm2d_forward.2} parent=0 // loop_pre_header
    _
  $region3: #{conv_norm2d_forward.2} parent=0 // loop_header
    %s12 = sphi 0, %s16
    %p13 = scmp.ge.s32.totalorder %s12, 6
    %s22 = sphi 0, %s24
    %s25 = sphi 0, %s22
    %s26 = sphi 0, %s25
    %s42 = sphi 0, %s26
    %s46 = sphi 0, %s46
    %s48 = sphi 0, %s46
    %s49 = sphi 0, %s48
    %s63 = sphi 0, %s49
    %s67 = sphi 0, %s67
    %s69 = sphi 0, %s67
    %s70 = sphi 0, %s69
    %s84 = sphi 0, %s70
    %s90 = sphi 0, %s92
    %s93 = sphi 0, %s90
    %s94 = sphi 0, %s93
    %s110 = sphi 0, %s94
    %s116 = sphi 0, %s118
    %s119 = sphi 0, %s116
    %s120 = sphi 0, %s119
    %s136 = sphi 0, %s120
    %s142 = sphi 0, %s144
    %s145 = sphi 0, %s142
    %s146 = sphi 0, %s145
    %s162 = sphi 0, %s146
  $region4: #{conv_norm2d_forward.2} parent=0 // loop_header_branch
    %15 = sbr.rel (%p13) target = $region8
  $region5: #{conv_norm2d_forward.2} parent=0 // loop_body
    %s17 = ssub.s32 %s12, 1
    %s18 = ssub.s32 %s12, 2
    %s19 = sadd.s32 %s12, 1
    %s20 = ssub.s32 %s12, %s19
    %p21 = scmp.eq.s32.totalorder %s20, 0
    %s23 = sadd.s32 %s22, 1
    %s24 = scalar_select %p21, %s22, %s23
    %p27 = pneg %p21
    %p28 = scmp.eq.s32.totalorder %s12, 3
    %p29 = por %p27, %p28
    %p30 = scmp.ne.s32.totalorder %s22, %s25
    %p31 = scmp.eq.s32.totalorder %s12, 0
    %p32 = por %p30, %p31
    %p33 = scmp.ne.s32.totalorder %s22, %s25
    %p34 = scmp.eq.s32.totalorder %s17, 3
    %p35 = por %p33, %p34
    %p36 = scmp.ne.s32.totalorder %s25, %s26
    %p37 = scmp.eq.s32.totalorder %s17, 0
    %p38 = por %p36, %p37
    %p39 = scmp.ne.s32.totalorder %s25, %s26
    %p40 = scmp.eq.s32.totalorder %s18, 3
    %p41 = por %p39, %p40
    %p43 = scmp.ne.s32.totalorder %s26, %s42
    %p44 = scmp.eq.s32.totalorder %s18, 0
    %p45 = por %p43, %p44
    %s47 = sadd.s32 %s46, 1
    %p50 = scmp.eq.s32.totalorder %s12, 3
    %p51 = scmp.ne.s32.totalorder %s46, %s48
    %p52 = scmp.eq.s32.totalorder %s12, 0
    %p53 = por %p51, %p52
    %p54 = scmp.ne.s32.totalorder %s46, %s48
    %p55 = scmp.eq.s32.totalorder %s17, 3
    %p56 = por %p54, %p55
    %p57 = scmp.ne.s32.totalorder %s48, %s49
    %p58 = scmp.eq.s32.totalorder %s17, 0
    %p59 = por %p57, %p58
    %p60 = scmp.ne.s32.totalorder %s48, %s49
    %p61 = scmp.eq.s32.totalorder %s18, 3
    %p62 = por %p60, %p61
    %p64 = scmp.ne.s32.totalorder %s49, %s63
    %p65 = scmp.eq.s32.totalorder %s18, 0
    %p66 = por %p64, %p65
    %s68 = sadd.s32 %s67, 1
    %p71 = scmp.eq.s32.totalorder %s12, 3
    %p72 = scmp.ne.s32.totalorder %s67, %s69
    %p73 = scmp.eq.s32.totalorder %s12, 0
    %p74 = por %p72, %p73
    %p75 = scmp.ne.s32.totalorder %s67, %s69
    %p76 = scmp.eq.s32.totalorder %s17, 3
    %p77 = por %p75, %p76
    %p78 = scmp.ne.s32.totalorder %s69, %s70
    %p79 = scmp.eq.s32.totalorder %s17, 0
    %p80 = por %p78, %p79
    %p81 = scmp.ne.s32.totalorder %s69, %s70
    %p82 = scmp.eq.s32.totalorder %s18, 3
    %p83 = por %p81, %p82
    %p85 = scmp.ne.s32.totalorder %s70, %s84
    %p86 = scmp.eq.s32.totalorder %s18, 0
    %p87 = por %p85, %p86
    %s88 = ssub.s32 %s12, %s19
    %p89 = scmp.eq.s32.totalorder %s88, 0
    %s91 = sadd.s32 %s90, 1
    %s92 = scalar_select %p89, %s90, %s91
    %p95 = pneg %p89
    %p96 = scmp.eq.s32.totalorder %s12, 3
    %p97 = por %p95, %p96
    %p98 = scmp.ne.s32.totalorder %s90, %s93
    %p99 = scmp.eq.s32.totalorder %s12, 0
    %p100 = por %p98, %p99
    %p101 = scmp.ne.s32.totalorder %s90, %s93
    %p102 = scmp.eq.s32.totalorder %s17, 3
    %p103 = por %p101, %p102
    %p104 = scmp.ne.s32.totalorder %s93, %s94
    %p105 = scmp.eq.s32.totalorder %s17, 0
    %p106 = por %p104, %p105
    %p107 = scmp.ne.s32.totalorder %s93, %s94
    %p108 = scmp.eq.s32.totalorder %s18, 3
    %p109 = por %p107, %p108
    %p111 = scmp.ne.s32.totalorder %s94, %s110
    %p112 = scmp.eq.s32.totalorder %s18, 0
    %p113 = por %p111, %p112
    %s114 = ssub.s32 %s12, %s19
    %p115 = scmp.eq.s32.totalorder %s114, 0
    %s117 = sadd.s32 %s116, 1
    %s118 = scalar_select %p115, %s116, %s117
    %p121 = pneg %p115
    %p122 = scmp.eq.s32.totalorder %s12, 3
    %p123 = por %p121, %p122
    %p124 = scmp.ne.s32.totalorder %s116, %s119
    %p125 = scmp.eq.s32.totalorder %s12, 0
    %p126 = por %p124, %p125
    %p127 = scmp.ne.s32.totalorder %s116, %s119
    %p128 = scmp.eq.s32.totalorder %s17, 3
    %p129 = por %p127, %p128
    %p130 = scmp.ne.s32.totalorder %s119, %s120
    %p131 = scmp.eq.s32.totalorder %s17, 0
    %p132 = por %p130, %p131
    %p133 = scmp.ne.s32.totalorder %s119, %s120
    %p134 = scmp.eq.s32.totalorder %s18, 3
    %p135 = por %p133, %p134
    %p137 = scmp.ne.s32.totalorder %s120, %s136
    %p138 = scmp.eq.s32.totalorder %s18, 0
    %p139 = por %p137, %p138
    %s140 = ssub.s32 %s12, %s19
    %p141 = scmp.eq.s32.totalorder %s140, 0
    %s143 = sadd.s32 %s142, 1
    %s144 = scalar_select %p141, %s142, %s143
    %p147 = pneg %p141
    %p148 = scmp.eq.s32.totalorder %s12, 3
    %p149 = por %p147, %p148
    %p150 = scmp.ne.s32.totalorder %s142, %s145
    %p151 = scmp.eq.s32.totalorder %s12, 0
    %p152 = por %p150, %p151
    %p153 = scmp.ne.s32.totalorder %s142, %s145
    %p154 = scmp.eq.s32.totalorder %s17, 3
    %p155 = por %p153, %p154
    %p156 = scmp.ne.s32.totalorder %s145, %s146
    %p157 = scmp.eq.s32.totalorder %s17, 0
    %p158 = por %p156, %p157
    %p159 = scmp.ne.s32.totalorder %s145, %s146
    %p160 = scmp.eq.s32.totalorder %s18, 3
    %p161 = por %p159, %p160
    %p163 = scmp.ne.s32.totalorder %s146, %s162
    %p164 = scmp.eq.s32.totalorder %s18, 0
    %p165 = por %p163, %p164
    %p166 = scmp.le.s32.totalorder 1, %s12
    %p167 = scmp.lt.s32.totalorder %s12, 5
    %p168 = pnand %p166, %p167
    %p169 = pneg %p168
    // Predicated region
    $region9: #{conv_norm2d_forward.2} parent=5 // pred_check
      _
    $region10: #{conv_norm2d_forward.2} parent=5 // pred_check_branch
      %171 = sbr.rel (%p168) target = $region12
    $region11: #{conv_norm2d_forward.2} parent=5 // pred_region
      %s172 = ssub.s32 %s12, 1
      // Predicated region
      $region13: #{conv_norm2d_forward.2} parent=11 // pred_check
        %p173 = pneg %p59
      $region14: #{conv_norm2d_forward.2} parent=11 // pred_check_branch
        %175 = sbr.rel (%p173) target = $region16
      $region15: #{conv_norm2d_forward.2} parent=11 // pred_region
        _
      $region16: #{conv_norm2d_forward.2} parent=11 // pred_fallthru
        _
      // Predicated region
      $region17: #{conv_norm2d_forward.2} parent=11 // pred_check
        %p176 = pneg %p80
      $region18: #{conv_norm2d_forward.2} parent=11 // pred_check_branch
        %178 = sbr.rel (%p176) target = $region20
      $region19: #{conv_norm2d_forward.2} parent=11 // pred_region
        _
      $region20: #{conv_norm2d_forward.2} parent=11 // pred_fallthru
        _
    $region12: #{conv_norm2d_forward.2} parent=5 // pred_fallthru
      _
    %p179 = scmp.lt.s32.totalorder %s12, 4
    // Predicated region
    $region21: #{conv_norm2d_forward.2} parent=5 // pred_check
      %p180 = pneg %p179
    $region22: #{conv_norm2d_forward.2} parent=5 // pred_check_branch
      %182 = sbr.rel (%p180) target = $region24
    $region23: #{conv_norm2d_forward.2} parent=5 // pred_region
      // Predicated region
      $region25: #{conv_norm2d_forward.2} parent=23 // pred_check
        %p183 = pneg %p32
      $region26: #{conv_norm2d_forward.2} parent=23 // pred_check_branch
        %185 = sbr.rel (%p183) target = $region28
      $region27: #{conv_norm2d_forward.2} parent=23 // pred_region
        %s186 = smul.u32 16, %s12
        %p187 = scmp.lt.s32.totalorder %s186, 63
        %s188 = scalar_select %p187, %s186, 63
        %s189 = smul.addr %s188, 8
        %s190 = scalar_lea.vmem %s0, %s189
        %s191 = smul.u32 16, %s12
      $region28: #{conv_norm2d_forward.2} parent=23 // pred_fallthru
        _
    $region24: #{conv_norm2d_forward.2} parent=5 // pred_fallthru
      _
    %p192 = scmp.le.s32.totalorder 1, %s12
    %p193 = scmp.lt.s32.totalorder %s12, 5
    %p194 = pnand %p192, %p193
    %p195 = pneg %p194
    // Predicated region
    $region29: #{conv_norm2d_forward.2} parent=5 // pred_check
      _
    $region30: #{conv_norm2d_forward.2} parent=5 // pred_check_branch
      %197 = sbr.rel (%p194) target = $region32
    $region31: #{conv_norm2d_forward.2} parent=5 // pred_region
      %s198 = ssub.s32 %s12, 1
      %s199 = smul.u32 16, %s17
      %p200 = scmp.lt.s32.totalorder %s199, 63
      %s201 = scalar_select %p200, %s199, 63
      %s202 = smul.addr %s201, 8
      %s203 = scalar_lea.vmem %s0, %s202
      %p204 = pneg %p38
      %p205 = pneg %p35
      %p206 = pneg %p59
      %p207 = pneg %p56
      %p208 = pneg %p80
      %p209 = pneg %p77
      %p210 = pneg %p106
      %p211 = pneg %p103
      %s212 = smul.u32 16, %s17
      %p213 = scmp.lt.s32.totalorder %s212, 63
      %s214 = scalar_select %p213, %s212, 63
      %s215 = smul.addr %s214, 8
      %s216 = scalar_lea.vmem %s3, %s215
      %p217 = pneg %p132
      %p218 = pneg %p129
      %p219 = scmp.lt.s32.totalorder %s17, 3
      %s220 = scalar_select %p219, %s17, 3
      %s221 = smul.addr %s220, 8
      %s222 = scalar_lea.vmem %s4, %s221
      %p223 = pneg %p158
      %p224 = pneg %p155
      %p225 = scmp.lt.s32.totalorder %s17, 3
      %s226 = scalar_select %p225, %s17, 3
      %s227 = smul.addr %s226, 8
      %s228 = scalar_lea.vmem %s5, %s227
      %s229 = smul.u32 16, %s17
      %p230 = scmp.lt.s32.totalorder %s229, 63
      %s231 = scalar_select %p230, %s229, 63
      %s232 = smul.addr %s231, 8
      %s233 = scalar_lea.vmem %s0, %s232
      %s234 = smul.u32 16, %s17
      %s235 = smul.u32 16, %s17
      %p236 = scmp.lt.s32.totalorder %s235, 63
      %s237 = scalar_select %p236, %s235, 63
      %s238 = smul.addr %s237, 8
      %s239 = scalar_lea.vmem %s3, %s238
      %s240 = smul.u32 16, %s17
      %p241 = scmp.lt.s32.totalorder %s17, 3
      %s242 = scalar_select %p241, %s17, 3
      %s243 = smul.addr %s242, 8
      %s244 = scalar_lea.vmem %s4, %s243
      %p245 = scmp.lt.s32.totalorder %s17, 3
      %s246 = scalar_select %p245, %s17, 3
      %s247 = smul.addr %s246, 8
      %s248 = scalar_lea.vmem %s5, %s247
      %v249 = vld [vmem:[%s233] sm:$0xff]
      %v250 = vld [vmem:[%s233 + $0x8] sm:$0xff]
      %v251 = vld [vmem:[%s233 + $0x10] sm:$0xff]
      %v252 = vld [vmem:[%s233 + $0x18] sm:$0xff]
      %v253 = vld [vmem:[%s233 + $0x20] sm:$0xff]
      %v254 = vld [vmem:[%s233 + $0x28] sm:$0xff]
      %v255 = vld [vmem:[%s233 + $0x30] sm:$0xff]
      %v256 = vld [vmem:[%s233 + $0x38] sm:$0xff]
      %v257 = vld [vmem:[%s233 + $0x40] sm:$0xff]
      %v258 = vld [vmem:[%s233 + $0x48] sm:$0xff]
      %v259 = vld [vmem:[%s233 + $0x50] sm:$0xff]
      %v260 = vld [vmem:[%s233 + $0x58] sm:$0xff]
      %v261 = vld [vmem:[%s233 + $0x60] sm:$0xff]
      %v262 = vld [vmem:[%s233 + $0x68] sm:$0xff]
      %v263 = vld [vmem:[%s233 + $0x70] sm:$0xff]
      %v264 = vld [vmem:[%s233 + $0x78] sm:$0xff]
      %v265 = vld [vmem:[%s1] sm:$0xff]
      %v266 = vld [vmem:[%s1 + $0x8] sm:$0xff]
      %v267 = vld [vmem:[%s1 + $0x10] sm:$0xff]
      %v268 = vld [vmem:[%s1 + $0x18] sm:$0xff]
      %v269 = vld [vmem:[%s1 + $0x20] sm:$0xff]
      %v270 = vld [vmem:[%s1 + $0x28] sm:$0xff]
      %v271 = vld [vmem:[%s1 + $0x30] sm:$0xff]
      %v272 = vld [vmem:[%s1 + $0x38] sm:$0xff]
      %v273 = vld [vmem:[%s1 + $0x40] sm:$0xff]
      %v274 = vld [vmem:[%s1 + $0x48] sm:$0xff]
      %v275 = vld [vmem:[%s1 + $0x50] sm:$0xff]
      %v276 = vld [vmem:[%s1 + $0x58] sm:$0xff]
      %v277 = vld [vmem:[%s1 + $0x60] sm:$0xff]
      %v278 = vld [vmem:[%s1 + $0x68] sm:$0xff]
      %v279 = vld [vmem:[%s1 + $0x70] sm:$0xff]
      %v280 = vld [vmem:[%s1 + $0x78] sm:$0xff]
      %281 = vmatprep.subr.mxu0 0.0
      %282 = vmatpush1.msra.mxu0 %v265
      %283 = vmatprep.subr.mxu0 0.0
      %284 = vmatpush1.msra.mxu0 %v266
      %285 = vmatprep.subr.mxu0 0.0
      %286 = vmatpush1.msra.mxu0 %v267
      %287 = vmatprep.subr.mxu0 0.0
      %288 = vmatpush1.msra.mxu0 %v268
      %289 = vmatprep.subr.mxu0 0.0
      %290 = vmatpush1.msra.mxu0 %v269
      %291 = vmatprep.subr.mxu0 0.0
      %292 = vmatpush1.msra.mxu0 %v270
      %293 = vmatprep.subr.mxu0 0.0
      %294 = vmatpush1.msra.mxu0 %v271
      %295 = vmatprep.subr.mxu0 0.0
      %296 = vmatpush1.msra.mxu0 %v272
      %297 = vmatprep.subr.mxu0 0.0
      %298 = vmatpush1.msra.mxu0 %v273
      %299 = vmatprep.subr.mxu0 0.0
      %300 = vmatpush1.msra.mxu0 %v274
      %301 = vmatprep.subr.mxu0 0.0
      %302 = vmatpush1.msra.mxu0 %v275
      %303 = vmatprep.subr.mxu0 0.0
      %304 = vmatpush1.msra.mxu0 %v276
      %305 = vmatprep.subr.mxu0 0.0
      %306 = vmatpush1.msra.mxu0 %v277
      %307 = vmatprep.subr.mxu0 0.0
      %308 = vmatpush1.msra.mxu0 %v278
      %309 = vmatprep.subr.mxu0 0.0
      %310 = vmatpush1.msra.mxu0 %v279
      %311 = vmatprep.subr.mxu0 0.0
      %312 = vmatpush1.msra.mxu0 %v280
      %313 = vmatprep.subr.mxu0 0.0
      %314 = vmatpush1.msra.mxu0 0.0
      %315 = vmatprep.subr.mxu0 0.0
      %316 = vmatpush1.msra.mxu0 0.0
      %317 = vmatprep.subr.mxu0 0.0
      %318 = vmatpush1.msra.mxu0 0.0
      %319 = vmatprep.subr.mxu0 0.0
      %320 = vmatpush1.msra.mxu0 0.0
      %321 = vmatprep.subr.mxu0 0.0
      %322 = vmatpush1.msra.mxu0 0.0
      %323 = vmatprep.subr.mxu0 0.0
      %324 = vmatpush1.msra.mxu0 0.0
      %325 = vmatprep.subr.mxu0 0.0
      %326 = vmatpush1.msra.mxu0 0.0
      %327 = vmatprep.subr.mxu0 0.0
      %328 = vmatpush1.msra.mxu0 0.0
      %329 = vmatprep.subr.mxu0 0.0
      %330 = vmatpush1.msra.mxu0 0.0
      %331 = vmatprep.subr.mxu0 0.0
      %332 = vmatpush1.msra.mxu0 0.0
      %333 = vmatprep.subr.mxu0 0.0
      %334 = vmatpush1.msra.mxu0 0.0
      %335 = vmatprep.subr.mxu0 0.0
      %336 = vmatpush1.msra.mxu0 0.0
      %337 = vmatprep.subr.mxu0 0.0
      %338 = vmatpush1.msra.mxu0 0.0
      %339 = vmatprep.subr.mxu0 0.0
      %340 = vmatpush1.msra.mxu0 0.0
      %341 = vmatprep.subr.mxu0 0.0
      %342 = vmatpush1.msra.mxu0 0.0
      %343 = vmatprep.subr.mxu0 0.0
      %344 = vmatpush1.msra.mxu0 0.0
      %345 = vmatprep.mubr.f32.mxu0 0.0
      %346 = vmatmul.mubr.f32.gmra.mrb[0].mxu0 %v249
      %v347 = vpop.f32.mrb[0].mxu0
      %v348 = vadd.f32 0.0, %v347
      %v349 = vpop.f32.mrb[0].mxu0
      %350 = vmatprep.mubr.f32.mxu0 0.0
      %351 = vmatmul.mubr.f32.gmra.mrb[0].mxu0 %v250
      %v352 = vpop.f32.mrb[0].mxu0
      %v353 = vadd.f32 0.0, %v352
      %v354 = vpop.f32.mrb[0].mxu0
      %355 = vmatprep.mubr.f32.mxu0 0.0
      %356 = vmatmul.mubr.f32.gmra.mrb[0].mxu0 %v251
      %v357 = vpop.f32.mrb[0].mxu0
      %v358 = vadd.f32 0.0, %v357
      %v359 = vpop.f32.mrb[0].mxu0
      %360 = vmatprep.mubr.f32.mxu0 0.0
      %361 = vmatmul.mubr.f32.gmra.mrb[0].mxu0 %v252
      %v362 = vpop.f32.mrb[0].mxu0
      %v363 = vadd.f32 0.0, %v362
      %v364 = vpop.f32.mrb[0].mxu0
      %365 = vmatprep.mubr.f32.mxu0 0.0
      %366 = vmatmul.mubr.f32.gmra.mrb[0].mxu0 %v253
      %v367 = vpop.f32.mrb[0].mxu0
      %v368 = vadd.f32 0.0, %v367
      %v369 = vpop.f32.mrb[0].mxu0
      %370 = vmatprep.mubr.f32.mxu0 0.0
      %371 = vmatmul.mubr.f32.gmra.mrb[0].mxu0 %v254
      %v372 = vpop.f32.mrb[0].mxu0
      %v373 = vadd.f32 0.0, %v372
      %v374 = vpop.f32.mrb[0].mxu0
      %375 = vmatprep.mubr.f32.mxu0 0.0
      %376 = vmatmul.mubr.f32.gmra.mrb[0].mxu0 %v255
      %v377 = vpop.f32.mrb[0].mxu0
      %v378 = vadd.f32 0.0, %v377
      %v379 = vpop.f32.mrb[0].mxu0
      %380 = vmatprep.mubr.f32.mxu0 0.0
      %381 = vmatmul.mubr.f32.gmra.mrb[0].mxu0 %v256
      %v382 = vpop.f32.mrb[0].mxu0
      %v383 = vadd.f32 0.0, %v382
      %v384 = vpop.f32.mrb[0].mxu0
      %385 = vmatprep.mubr.f32.mxu0 0.0
      %386 = vmatmul.mubr.f32.gmra.mrb[0].mxu0 %v257
      %v387 = vpop.f32.mrb[0].mxu0
      %v388 = vadd.f32 0.0, %v387
      %v389 = vpop.f32.mrb[0].mxu0
      %390 = vmatprep.mubr.f32.mxu0 0.0
      %391 = vmatmul.mubr.f32.gmra.mrb[0].mxu0 %v258
      %v392 = vpop.f32.mrb[0].mxu0
      %v393 = vadd.f32 0.0, %v392
      %v394 = vpop.f32.mrb[0].mxu0
      %395 = vmatprep.mubr.f32.mxu0 0.0
      %396 = vmatmul.mubr.f32.gmra.mrb[0].mxu0 %v259
      %v397 = vpop.f32.mrb[0].mxu0
      %v398 = vadd.f32 0.0, %v397
      %v399 = vpop.f32.mrb[0].mxu0
      %400 = vmatprep.mubr.f32.mxu0 0.0
      %401 = vmatmul.mubr.f32.gmra.mrb[0].mxu0 %v260
      %v402 = vpop.f32.mrb[0].mxu0
      %v403 = vadd.f32 0.0, %v402
      %v404 = vpop.f32.mrb[0].mxu0
      %405 = vmatprep.mubr.f32.mxu0 0.0
      %406 = vmatmul.mubr.f32.gmra.mrb[0].mxu0 %v261
      %v407 = vpop.f32.mrb[0].mxu0
      %v408 = vadd.f32 0.0, %v407
      %v409 = vpop.f32.mrb[0].mxu0
      %410 = vmatprep.mubr.f32.mxu0 0.0
      %411 = vmatmul.mubr.f32.gmra.mrb[0].mxu0 %v262
      %v412 = vpop.f32.mrb[0].mxu0
      %v413 = vadd.f32 0.0, %v412
      %v414 = vpop.f32.mrb[0].mxu0
      %415 = vmatprep.mubr.f32.mxu0 0.0
      %416 = vmatmul.mubr.f32.gmra.mrb[0].mxu0 %v263
      %v417 = vpop.f32.mrb[0].mxu0
      %v418 = vadd.f32 0.0, %v417
      %v419 = vpop.f32.mrb[0].mxu0
      %420 = vmatprep.mubr.f32.mxu0 0.0
      %421 = vmatmul.mubr.f32.gmra.mrb[0].mxu0 %v264
      %v422 = vpop.f32.mrb[0].mxu0
      %v423 = vadd.f32 0.0, %v422
      %v424 = vpop.f32.mrb[0].mxu0
      %425 = vdwg.mxu0
      %v426 = vld [vmem:[%s2] sm:$0x1]
      %v428 = vlaneseq
      %v429 = vshrl.u32 %v428, 7
      %v430 = vsub.s32 0, %v429
      %v431 = vrot.slane %v426, %v430
      %v433 = vadd.f32 %v348, %v431
      %v434 = vadd.f32 %v353, %v431
      %v435 = vadd.f32 %v358, %v431
      %v436 = vadd.f32 %v363, %v431
      %v437 = vadd.f32 %v368, %v431
      %v438 = vadd.f32 %v373, %v431
      %v439 = vadd.f32 %v378, %v431
      %v440 = vadd.f32 %v383, %v431
      %v441 = vadd.f32 %v388, %v431
      %v442 = vadd.f32 %v393, %v431
      %v443 = vadd.f32 %v398, %v431
      %v444 = vadd.f32 %v403, %v431
      %v445 = vadd.f32 %v408, %v431
      %v446 = vadd.f32 %v413, %v431
      %v447 = vadd.f32 %v418, %v431
      %v448 = vadd.f32 %v423, %v431
      %449 = vst [vmem:[%s239] sm:$0xff] %v433
      %450 = vst [vmem:[%s239 + $0x8] sm:$0xff] %v434
      %451 = vst [vmem:[%s239 + $0x10] sm:$0xff] %v435
      %452 = vst [vmem:[%s239 + $0x18] sm:$0xff] %v436
      %453 = vst [vmem:[%s239 + $0x20] sm:$0xff] %v437
      %454 = vst [vmem:[%s239 + $0x28] sm:$0xff] %v438
      %455 = vst [vmem:[%s239 + $0x30] sm:$0xff] %v439
      %456 = vst [vmem:[%s239 + $0x38] sm:$0xff] %v440
      %457 = vst [vmem:[%s239 + $0x40] sm:$0xff] %v441
      %458 = vst [vmem:[%s239 + $0x48] sm:$0xff] %v442
      %459 = vst [vmem:[%s239 + $0x50] sm:$0xff] %v443
      %460 = vst [vmem:[%s239 + $0x58] sm:$0xff] %v444
      %461 = vst [vmem:[%s239 + $0x60] sm:$0xff] %v445
      %462 = vst [vmem:[%s239 + $0x68] sm:$0xff] %v446
      %463 = vst [vmem:[%s239 + $0x70] sm:$0xff] %v447
      %464 = vst [vmem:[%s239 + $0x78] sm:$0xff] %v448
      %v465 = vadd.f32 %v348, %v353
      %v466 = vadd.f32 %v465, %v358
      %v467 = vadd.f32 %v466, %v363
      %v468 = vadd.f32 %v467, %v368
      %v469 = vadd.f32 %v468, %v373
      %v470 = vadd.f32 %v469, %v378
      %v471 = vadd.f32 %v470, %v383
      %v472 = vadd.f32 %v471, %v388
      %v473 = vadd.f32 %v472, %v393
      %v474 = vadd.f32 %v473, %v398
      %v475 = vadd.f32 %v474, %v403
      %v476 = vadd.f32 %v475, %v408
      %v477 = vadd.f32 %v476, %v413
      %v478 = vadd.f32 %v477, %v418
      %v479 = vadd.f32 %v478, %v423
      %v480 = vrot.slane %v479, 4
      %v481 = vadd.f32 %v479, %v480
      %v482 = vrot.slane %v481, 2
      %v483 = vadd.f32 %v481, %v482
      %v484 = vrot.slane %v483, 1
      %v485 = vadd.f32 %v483, %v484
      %v486 = vmul.f32 %v348, %v348
      %v487 = vmul.f32 %v353, %v353
      %v488 = vmul.f32 %v358, %v358
      %v489 = vmul.f32 %v363, %v363
      %v490 = vmul.f32 %v368, %v368
      %v491 = vmul.f32 %v373, %v373
      %v492 = vmul.f32 %v378, %v378
      %v493 = vmul.f32 %v383, %v383
      %v494 = vmul.f32 %v388, %v388
      %v495 = vmul.f32 %v393, %v393
      %v496 = vmul.f32 %v398, %v398
      %v497 = vmul.f32 %v403, %v403
      %v498 = vmul.f32 %v408, %v408
      %v499 = vmul.f32 %v413, %v413
      %v500 = vmul.f32 %v418, %v418
      %v501 = vmul.f32 %v423, %v423
      %v502 = vadd.f32 %v486, %v487
      %v503 = vadd.f32 %v502, %v488
      %v504 = vadd.f32 %v503, %v489
      %v505 = vadd.f32 %v504, %v490
      %v506 = vadd.f32 %v505, %v491
      %v507 = vadd.f32 %v506, %v492
      %v508 = vadd.f32 %v507, %v493
      %v509 = vadd.f32 %v508, %v494
      %v510 = vadd.f32 %v509, %v495
      %v511 = vadd.f32 %v510, %v496
      %v512 = vadd.f32 %v511, %v497
      %v513 = vadd.f32 %v512, %v498
      %v514 = vadd.f32 %v513, %v499
      %v515 = vadd.f32 %v514, %v500
      %v516 = vadd.f32 %v515, %v501
      %v517 = vrot.slane %v516, 4
      %v518 = vadd.f32 %v516, %v517
      %v519 = vrot.slane %v518, 2
      %v520 = vadd.f32 %v518, %v519
      %v521 = vrot.slane %v520, 1
      %v522 = vadd.f32 %v520, %v521
      %523 = vst [vmem:[%s244] sm:$0xff] %v485
      %524 = vst [vmem:[%s248] sm:$0xff] %v522
      %s525 = smul.u32 16, %s17
      %p526 = scmp.lt.s32.totalorder %s525, 63
      %s527 = scalar_select %p526, %s525, 63
      %s528 = smul.addr %s527, 8
      %s529 = scalar_lea.vmem %s3, %s528
      %p530 = scmp.lt.s32.totalorder %s17, 3
      %s531 = scalar_select %p530, %s17, 3
      %s532 = smul.addr %s531, 8
      %s533 = scalar_lea.vmem %s4, %s532
      %p534 = scmp.lt.s32.totalorder %s17, 3
      %s535 = scalar_select %p534, %s17, 3
      %s536 = smul.addr %s535, 8
      %s537 = scalar_lea.vmem %s5, %s536
      // Predicated region
      $region33: #{conv_norm2d_forward.2} parent=31 // pred_check
        %p538 = pneg %p103
      $region34: #{conv_norm2d_forward.2} parent=31 // pred_check_branch
        %540 = sbr.rel (%p538) target = $region36
      $region35: #{conv_norm2d_forward.2} parent=31 // pred_region
        %s541 = smul.u32 16, %s17
      $region36: #{conv_norm2d_forward.2} parent=31 // pred_fallthru
        _
      // Predicated region
      $region37: #{conv_norm2d_forward.2} parent=31 // pred_check
        %p542 = pneg %p129
      $region38: #{conv_norm2d_forward.2} parent=31 // pred_check_branch
        %544 = sbr.rel (%p542) target = $region40
      $region39: #{conv_norm2d_forward.2} parent=31 // pred_region
        _
      $region40: #{conv_norm2d_forward.2} parent=31 // pred_fallthru
        _
      // Predicated region
      $region41: #{conv_norm2d_forward.2} parent=31 // pred_check
        %p545 = pneg %p155
      $region42: #{conv_norm2d_forward.2} parent=31 // pred_check_branch
        %547 = sbr.rel (%p545) target = $region44
      $region43: #{conv_norm2d_forward.2} parent=31 // pred_region
        _
      $region44: #{conv_norm2d_forward.2} parent=31 // pred_fallthru
        _
    $region32: #{conv_norm2d_forward.2} parent=5 // pred_fallthru
      _
    %p548 = scmp.le.s32.totalorder 2, %s12
    // Predicated region
    $region45: #{conv_norm2d_forward.2} parent=5 // pred_check
      %p549 = pneg %p548
    $region46: #{conv_norm2d_forward.2} parent=5 // pred_check_branch
      %551 = sbr.rel (%p549) target = $region48
    $region47: #{conv_norm2d_forward.2} parent=5 // pred_region
      %s552 = ssub.s32 %s12, 2
      // Predicated region
      $region49: #{conv_norm2d_forward.2} parent=47 // pred_check
        %p553 = pneg %p109
      $region50: #{conv_norm2d_forward.2} parent=47 // pred_check_branch
        %555 = sbr.rel (%p553) target = $region52
      $region51: #{conv_norm2d_forward.2} parent=47 // pred_region
        %s556 = smul.u32 16, %s18
        %p557 = scmp.lt.s32.totalorder %s556, 63
        %s558 = scalar_select %p557, %s556, 63
        %s559 = smul.addr %s558, 8
        %s560 = scalar_lea.vmem %s3, %s559
      $region52: #{conv_norm2d_forward.2} parent=47 // pred_fallthru
        _
      // Predicated region
      $region53: #{conv_norm2d_forward.2} parent=47 // pred_check
        %p561 = pneg %p135
      $region54: #{conv_norm2d_forward.2} parent=47 // pred_check_branch
        %563 = sbr.rel (%p561) target = $region56
      $region55: #{conv_norm2d_forward.2} parent=47 // pred_region
        %p564 = scmp.lt.s32.totalorder %s18, 3
        %s565 = scalar_select %p564, %s18, 3
        %s566 = smul.addr %s565, 8
        %s567 = scalar_lea.vmem %s4, %s566
      $region56: #{conv_norm2d_forward.2} parent=47 // pred_fallthru
        _
      // Predicated region
      $region57: #{conv_norm2d_forward.2} parent=47 // pred_check
        %p568 = pneg %p161
      $region58: #{conv_norm2d_forward.2} parent=47 // pred_check_branch
        %570 = sbr.rel (%p568) target = $region60
      $region59: #{conv_norm2d_forward.2} parent=47 // pred_region
        %p571 = scmp.lt.s32.totalorder %s18, 3
        %s572 = scalar_select %p571, %s18, 3
        %s573 = smul.addr %s572, 8
        %s574 = scalar_lea.vmem %s5, %s573
      $region60: #{conv_norm2d_forward.2} parent=47 // pred_fallthru
        _
    $region48: #{conv_norm2d_forward.2} parent=5 // pred_fallthru
      _
  $region6: #{conv_norm2d_forward.2} parent=0 // loop_footer
    %s16 = sadd.s32 1, %s12
  $region7: #{conv_norm2d_forward.2} parent=0 // loop_footer_branch
    %11 = sbr.rel target = $region3
  $region8: #{conv_norm2d_forward.2} parent=0 // loop_exit
    _

</llo_original>
